<compile_context>
chip_gen: v5e
topology: v5e:2x2
jax: 0.10.0
libtpu: 0.0.40
codegen_flags: <defaults>
</compile_context>

<pallas_src>
import functools

import jax
import jax.numpy as jnp
from jax import lax
from jax.experimental import pallas as pl
from jax.experimental.pallas import tpu as pltpu


def _linear_kernel(x_ref, w_ref, b_ref, o_ref):
    # x_ref: (TM, K)   w_ref: (Mp, K)   b_ref: (1, Mp)   o_ref: (TM, Mp)
    acc = lax.dot_general(
        x_ref[...], w_ref[...],
        dimension_numbers=(((1,), (1,)), ((), ())),   # contract K with K
        preferred_element_type=jnp.float32,
    )
    o_ref[...] = (acc + b_ref[...]).astype(o_ref.dtype)


def _round_up(v, mult):
    return ((v + mult - 1) // mult) * mult


@functools.partial(jax.jit, static_argnames=("tm",))
def linear_net_forward(x, weight, bias, *, tm=512):
    """Forward pass of LinearNet.

    x:      (N, C, H, W) float32 (any trailing shape; flattened per-sample)
    weight: (num_classes, input_size)  -- PyTorch nn.Linear convention (M, K)
    bias:   (num_classes,)
    returns (N, num_classes)
    """
    n = x.shape[0]
    x_flat = x.reshape(n, -1)                       # (N, K), row-major == torch .view
    k = x_flat.shape[1]
    m = weight.shape[0]

    # --- pad class dim to a lane-dense multiple of 128 -----------------------
    m_pad = max(128, _round_up(m, 128))
    if m_pad != m:
        weight = jnp.pad(weight, ((0, m_pad - m), (0, 0)))
        bias = jnp.pad(bias, (0, m_pad - m))
    b2d = bias.reshape(1, m_pad)

    # --- pad / tile batch dim -------------------------------------------------
    tm_eff = min(tm, max(8, _round_up(n, 8)))       # tile rows (multiple of 8)
    n_pad = _round_up(max(n, tm_eff), tm_eff)
    if n_pad != n:
        x_flat = jnp.pad(x_flat, ((0, n_pad - n), (0, 0)))
    grid = (n_pad // tm_eff,)

    out = pl.pallas_call(
        _linear_kernel,
        out_shape=jax.ShapeDtypeStruct((n_pad, m_pad), x.dtype),
        grid_spec=pl.GridSpec(
            grid=grid,
            in_specs=[
                pl.BlockSpec((tm_eff, k), lambda i: (i, 0)),   # x tiles stream
                pl.BlockSpec((m_pad, k), lambda i: (0, 0)),    # weight resident
                pl.BlockSpec((1, m_pad), lambda i: (0, 0)),    # bias resident
            ],
            out_specs=pl.BlockSpec((tm_eff, m_pad), lambda i: (i, 0)),
        ),
        compiler_params=pltpu.CompilerParams(
            dimension_semantics=("parallel",),
        ),
    )(x_flat, weight, b2d)

    # Slice away N / M padding.
    return out[:n, :m]


if __name__ == "__main__":
    # Small shapes consistent with the module: batch=2, C=4, H=W=16
    # => input_size = 4*16*16 = 1024, num_classes = 16.
    batch, c, h, w = 2, 4, 16, 16
    input_size = c * h * w
    num_classes = 16

    key = jax.random.PRNGKey(0)
    kx, kw, kb = jax.random.split(key, 3)

    x = jax.random.normal(kx, (batch, c, h, w), dtype=jnp.float32)

    # Deterministic parameter init (mimics PyTorch nn.Linear default:
    # uniform(-1/sqrt(in_features), 1/sqrt(in_features))).
    bound = 1.0 / jnp.sqrt(jnp.float32(input_size))
    weight = jax.random.uniform(
        kw, (num_classes, input_size), dtype=jnp.float32,
        minval=-bound, maxval=bound)
    bias = jax.random.uniform(
        kb, (num_classes,), dtype=jnp.float32, minval=-bound, maxval=bound)

    y = linear_net_forward(x, weight, bias)
    y = jax.block_until_ready(y)

    # Sanity check against plain JAX reference.
    y_ref = x.reshape(batch, -1) @ weight.T + bias
    assert y.shape == (batch, num_classes)
    assert jnp.allclose(y, y_ref, atol=1e-4, rtol=1e-4)

    print("KERNEL_OK")
</pallas_src>

<mosaic_0001>
module attributes {stable_mosaic.version = 11 : i64} {
  func.func @_linear_kernel(%arg0: i32, %arg1: memref<8x1024xf32, #tpu.memory_space<vmem>>, %arg2: memref<128x1024xf32, #tpu.memory_space<vmem>>, %arg3: memref<1x128xf32, #tpu.memory_space<vmem>>, %arg4: memref<8x128xf32, #tpu.memory_space<vmem>>) attributes {dimension_semantics = [#tpu.dimension_semantics<parallel>], iteration_bounds = array<i64: 1>, scalar_prefetch = 0 : i64, scratch_operands = 0 : i64, tpu.core_type = #tpu.core_type<tc>, window_params = [{transform_indices = @transform_0, window_bounds = array<i64: 8, 1024>}, {pipeline_mode = #tpu.pipeline_mode<synchronous>, transform_indices = @transform_1, window_bounds = array<i64: 128, 1024>}, {pipeline_mode = #tpu.pipeline_mode<synchronous>, transform_indices = @transform_2, window_bounds = array<i64: 1, 128>}, {transform_indices = @transform_3, window_bounds = array<i64: 8, 128>}]} {
    %c0 = arith.constant 0 : index
    %c0_0 = arith.constant 0 : index
    %0 = vector.load %arg1[%c0, %c0_0] : memref<8x1024xf32, #tpu.memory_space<vmem>>, vector<8x1024xf32>
    %c0_1 = arith.constant 0 : index
    %c0_2 = arith.constant 0 : index
    %1 = vector.load %arg2[%c0_1, %c0_2] : memref<128x1024xf32, #tpu.memory_space<vmem>>, vector<128x1024xf32>
    %cst = arith.constant dense<0.000000e+00> : vector<8x128xf32>
    %2 = tpu.matmul %0, %1, %cst {dimension_numbers = #tpu.dot_dimension_numbers<[1], [1], [0], [0], [0, 0, 1, 0], [], []>} : vector<8x1024xf32>, vector<128x1024xf32>, vector<8x128xf32> -> vector<8x128xf32>
    %c0_3 = arith.constant 0 : index
    %c0_4 = arith.constant 0 : index
    %3 = vector.load %arg3[%c0_3, %c0_4] : memref<1x128xf32, #tpu.memory_space<vmem>>, vector<1x128xf32>
    %4 = vector.broadcast %3 : vector<1x128xf32> to vector<8x128xf32>
    %5 = arith.addf %2, %4 : vector<8x128xf32>
    %c0_5 = arith.constant 0 : index
    %c0_6 = arith.constant 0 : index
    %6 = vector.load %arg4[%c0_5, %c0_6] : memref<8x128xf32, #tpu.memory_space<vmem>>, vector<8x128xf32>
    tpu.vector_store %arg4[%c0_5, %c0_6], %5 {strides = array<i32>} : memref<8x128xf32, #tpu.memory_space<vmem>>, vector<8x128xf32>,
    return
  }
  func.func @transform_0(%arg0: i32) -> (i32, i32) {
    %c0_i32 = arith.constant 0 : i32
    %c0_i32_0 = arith.constant 0 : i32
    return %arg0, %c0_i32 : i32, i32
  }
  func.func @transform_1(%arg0: i32) -> (i32, i32) {
    %c0_i32 = arith.constant 0 : i32
    %c0_i32_0 = arith.constant 0 : i32
    %c0_i32_1 = arith.constant 0 : i32
    return %c0_i32, %c0_i32_0 : i32, i32
  }
  func.func @transform_2(%arg0: i32) -> (i32, i32) {
    %c0_i32 = arith.constant 0 : i32
    %c0_i32_0 = arith.constant 0 : i32
    %c0_i32_1 = arith.constant 0 : i32
    return %c0_i32, %c0_i32_0 : i32, i32
  }
  func.func @transform_3(%arg0: i32) -> (i32, i32) {
    %c0_i32 = arith.constant 0 : i32
    %c0_i32_0 = arith.constant 0 : i32
    return %arg0, %c0_i32 : i32, i32
  }
}

</mosaic_0001>

<llo_original>
// kernel: linear_net_forward.1
$region0: #{linear_net_forward.1}
  #allocation0 [shape = 'u32[]', space=smem, size = 0x4, offset = 0x4, fixed_abs, tag = 'smem constant byte address 0x4 - core index']
  #allocation1 [shape = 'u32[72,128]{1,0:T(1,128)}', space=vmem, size = 0x9000, scoped, tag = 'internal scratch']
  %s0 = inlined_call_operand.vmem [shape: f32[8,1024], index: 0, kind: input, shape index: {}]
  %s1 = inlined_call_operand.vmem [shape: f32[128,1024], index: 1, kind: input, shape index: {}]
  %s2 = inlined_call_operand.vmem [shape: f32[1,128], index: 2, kind: input, shape index: {}]
  %s3 = inlined_call_operand.vmem [shape: f32[8,128], index: 3, kind: output, shape index: {}]
  %s4 = sld [smem:[#allocation0]]
  $region22: #{linear_net_forward.1} parent=0
    _
  %s6 = ssub.s32 1, %s4
  %s7 = scalar_select 0, %s6, %s4
  // Predicated region
  $region2: #{linear_net_forward.1} parent=0 // pred_check
    _
  $region3: #{linear_net_forward.1} parent=0 // pred_check_branch
    %9 = sbr.rel (0) target = $region5
  $region4: #{linear_net_forward.1} parent=0 // pred_region
    _
  $region5: #{linear_net_forward.1} parent=0 // pred_fallthru
    _
  // Predicated region
  $region6: #{linear_net_forward.1} parent=0 // pred_check
    _
  $region7: #{linear_net_forward.1} parent=0 // pred_check_branch
    %11 = sbr.rel (0) target = $region9
  $region8: #{linear_net_forward.1} parent=0 // pred_region
    _
  $region9: #{linear_net_forward.1} parent=0 // pred_fallthru
    _
  // Predicated region
  $region10: #{linear_net_forward.1} parent=0 // pred_check
    _
  $region11: #{linear_net_forward.1} parent=0 // pred_check_branch
    %13 = sbr.rel (0) target = $region13
  $region12: #{linear_net_forward.1} parent=0 // pred_region
    _
  $region13: #{linear_net_forward.1} parent=0 // pred_fallthru
    _
  %v14 = vld [vmem:[%s0] sm:$0xff]
  %v15 = vld [vmem:[%s0 + $0x8] sm:$0xff]
  %v16 = vld [vmem:[%s0 + $0x10] sm:$0xff]
  %v17 = vld [vmem:[%s0 + $0x18] sm:$0xff]
  %v18 = vld [vmem:[%s0 + $0x20] sm:$0xff]
  %v19 = vld [vmem:[%s0 + $0x28] sm:$0xff]
  %v20 = vld [vmem:[%s0 + $0x30] sm:$0xff]
  %v21 = vld [vmem:[%s0 + $0x38] sm:$0xff]
  %v22 = vld [vmem:[%s1] sm:$0xff]
  %v23 = vld [vmem:[%s1 + $0x8] sm:$0xff]
  %v24 = vld [vmem:[%s1 + $0x10] sm:$0xff]
  %v25 = vld [vmem:[%s1 + $0x18] sm:$0xff]
  %v26 = vld [vmem:[%s1 + $0x20] sm:$0xff]
  %v27 = vld [vmem:[%s1 + $0x28] sm:$0xff]
  %v28 = vld [vmem:[%s1 + $0x30] sm:$0xff]
  %v29 = vld [vmem:[%s1 + $0x38] sm:$0xff]
  %v30 = vld [vmem:[%s1 + $0x40] sm:$0xff]
  %v31 = vld [vmem:[%s1 + $0x48] sm:$0xff]
  %v32 = vld [vmem:[%s1 + $0x50] sm:$0xff]
  %v33 = vld [vmem:[%s1 + $0x58] sm:$0xff]
  %v34 = vld [vmem:[%s1 + $0x60] sm:$0xff]
  %v35 = vld [vmem:[%s1 + $0x68] sm:$0xff]
  %v36 = vld [vmem:[%s1 + $0x70] sm:$0xff]
  %v37 = vld [vmem:[%s1 + $0x78] sm:$0xff]
  %v38 = vld [vmem:[%s1 + $0x80] sm:$0xff]
  %v39 = vld [vmem:[%s1 + $0x88] sm:$0xff]
  %v40 = vld [vmem:[%s1 + $0x90] sm:$0xff]
  %v41 = vld [vmem:[%s1 + $0x98] sm:$0xff]
  %v42 = vld [vmem:[%s1 + $0xa0] sm:$0xff]
  %v43 = vld [vmem:[%s1 + $0xa8] sm:$0xff]
  %v44 = vld [vmem:[%s1 + $0xb0] sm:$0xff]
  %v45 = vld [vmem:[%s1 + $0xb8] sm:$0xff]
  %v46 = vld [vmem:[%s1 + $0xc0] sm:$0xff]
  %v47 = vld [vmem:[%s1 + $0xc8] sm:$0xff]
  %v48 = vld [vmem:[%s1 + $0xd0] sm:$0xff]
  %v49 = vld [vmem:[%s1 + $0xd8] sm:$0xff]
  %v50 = vld [vmem:[%s1 + $0xe0] sm:$0xff]
  %v51 = vld [vmem:[%s1 + $0xe8] sm:$0xff]
  %v52 = vld [vmem:[%s1 + $0xf0] sm:$0xff]
  %v53 = vld [vmem:[%s1 + $0xf8] sm:$0xff]
  %v54 = vld [vmem:[%s1 + $0x100] sm:$0xff]
  %v55 = vld [vmem:[%s1 + $0x108] sm:$0xff]
  %v56 = vld [vmem:[%s1 + $0x110] sm:$0xff]
  %v57 = vld [vmem:[%s1 + $0x118] sm:$0xff]
  %v58 = vld [vmem:[%s1 + $0x120] sm:$0xff]
  %v59 = vld [vmem:[%s1 + $0x128] sm:$0xff]
  %v60 = vld [vmem:[%s1 + $0x130] sm:$0xff]
  %v61 = vld [vmem:[%s1 + $0x138] sm:$0xff]
  %v62 = vld [vmem:[%s1 + $0x140] sm:$0xff]
  %v63 = vld [vmem:[%s1 + $0x148] sm:$0xff]
  %v64 = vld [vmem:[%s1 + $0x150] sm:$0xff]
  %v65 = vld [vmem:[%s1 + $0x158] sm:$0xff]
  %v66 = vld [vmem:[%s1 + $0x160] sm:$0xff]
  %v67 = vld [vmem:[%s1 + $0x168] sm:$0xff]
  %v68 = vld [vmem:[%s1 + $0x170] sm:$0xff]
  %v69 = vld [vmem:[%s1 + $0x178] sm:$0xff]
  %v70 = vld [vmem:[%s1 + $0x180] sm:$0xff]
  %v71 = vld [vmem:[%s1 + $0x188] sm:$0xff]
  %v72 = vld [vmem:[%s1 + $0x190] sm:$0xff]
  %v73 = vld [vmem:[%s1 + $0x198] sm:$0xff]
  %v74 = vld [vmem:[%s1 + $0x1a0] sm:$0xff]
  %v75 = vld [vmem:[%s1 + $0x1a8] sm:$0xff]
  %v76 = vld [vmem:[%s1 + $0x1b0] sm:$0xff]
  %v77 = vld [vmem:[%s1 + $0x1b8] sm:$0xff]
  %v78 = vld [vmem:[%s1 + $0x1c0] sm:$0xff]
  %v79 = vld [vmem:[%s1 + $0x1c8] sm:$0xff]
  %v80 = vld [vmem:[%s1 + $0x1d0] sm:$0xff]
  %v81 = vld [vmem:[%s1 + $0x1d8] sm:$0xff]
  %v82 = vld [vmem:[%s1 + $0x1e0] sm:$0xff]
  %v83 = vld [vmem:[%s1 + $0x1e8] sm:$0xff]
  %v84 = vld [vmem:[%s1 + $0x1f0] sm:$0xff]
  %v85 = vld [vmem:[%s1 + $0x1f8] sm:$0xff]
  %v86 = vld [vmem:[%s1 + $0x200] sm:$0xff]
  %v87 = vld [vmem:[%s1 + $0x208] sm:$0xff]
  %v88 = vld [vmem:[%s1 + $0x210] sm:$0xff]
  %v89 = vld [vmem:[%s1 + $0x218] sm:$0xff]
  %v90 = vld [vmem:[%s1 + $0x220] sm:$0xff]
  %v91 = vld [vmem:[%s1 + $0x228] sm:$0xff]
  %v92 = vld [vmem:[%s1 + $0x230] sm:$0xff]
  %v93 = vld [vmem:[%s1 + $0x238] sm:$0xff]
  %v94 = vld [vmem:[%s1 + $0x240] sm:$0xff]
  %v95 = vld [vmem:[%s1 + $0x248] sm:$0xff]
  %v96 = vld [vmem:[%s1 + $0x250] sm:$0xff]
  %v97 = vld [vmem:[%s1 + $0x258] sm:$0xff]
  %v98 = vld [vmem:[%s1 + $0x260] sm:$0xff]
  %v99 = vld [vmem:[%s1 + $0x268] sm:$0xff]
  %v100 = vld [vmem:[%s1 + $0x270] sm:$0xff]
  %v101 = vld [vmem:[%s1 + $0x278] sm:$0xff]
  %v102 = vld [vmem:[%s1 + $0x280] sm:$0xff]
  %v103 = vld [vmem:[%s1 + $0x288] sm:$0xff]
  %v104 = vld [vmem:[%s1 + $0x290] sm:$0xff]
  %v105 = vld [vmem:[%s1 + $0x298] sm:$0xff]
  %v106 = vld [vmem:[%s1 + $0x2a0] sm:$0xff]
  %v107 = vld [vmem:[%s1 + $0x2a8] sm:$0xff]
  %v108 = vld [vmem:[%s1 + $0x2b0] sm:$0xff]
  %v109 = vld [vmem:[%s1 + $0x2b8] sm:$0xff]
  %v110 = vld [vmem:[%s1 + $0x2c0] sm:$0xff]
  %v111 = vld [vmem:[%s1 + $0x2c8] sm:$0xff]
  %v112 = vld [vmem:[%s1 + $0x2d0] sm:$0xff]
  %v113 = vld [vmem:[%s1 + $0x2d8] sm:$0xff]
  %v114 = vld [vmem:[%s1 + $0x2e0] sm:$0xff]
  %v115 = vld [vmem:[%s1 + $0x2e8] sm:$0xff]
  %v116 = vld [vmem:[%s1 + $0x2f0] sm:$0xff]
  %v117 = vld [vmem:[%s1 + $0x2f8] sm:$0xff]
  %v118 = vld [vmem:[%s1 + $0x300] sm:$0xff]
  %v119 = vld [vmem:[%s1 + $0x308] sm:$0xff]
  %v120 = vld [vmem:[%s1 + $0x310] sm:$0xff]
  %v121 = vld [vmem:[%s1 + $0x318] sm:$0xff]
  %v122 = vld [vmem:[%s1 + $0x320] sm:$0xff]
  %v123 = vld [vmem:[%s1 + $0x328] sm:$0xff]
  %v124 = vld [vmem:[%s1 + $0x330] sm:$0xff]
  %v125 = vld [vmem:[%s1 + $0x338] sm:$0xff]
  %v126 = vld [vmem:[%s1 + $0x340] sm:$0xff]
  %v127 = vld [vmem:[%s1 + $0x348] sm:$0xff]
  %v128 = vld [vmem:[%s1 + $0x350] sm:$0xff]
  %v129 = vld [vmem:[%s1 + $0x358] sm:$0xff]
  %v130 = vld [vmem:[%s1 + $0x360] sm:$0xff]
  %v131 = vld [vmem:[%s1 + $0x368] sm:$0xff]
  %v132 = vld [vmem:[%s1 + $0x370] sm:$0xff]
  %v133 = vld [vmem:[%s1 + $0x378] sm:$0xff]
  %v134 = vld [vmem:[%s1 + $0x380] sm:$0xff]
  %v135 = vld [vmem:[%s1 + $0x388] sm:$0xff]
  %v136 = vld [vmem:[%s1 + $0x390] sm:$0xff]
  %v137 = vld [vmem:[%s1 + $0x398] sm:$0xff]
  %v138 = vld [vmem:[%s1 + $0x3a0] sm:$0xff]
  %v139 = vld [vmem:[%s1 + $0x3a8] sm:$0xff]
  %v140 = vld [vmem:[%s1 + $0x3b0] sm:$0xff]
  %v141 = vld [vmem:[%s1 + $0x3b8] sm:$0xff]
  %v142 = vld [vmem:[%s1 + $0x3c0] sm:$0xff]
  %v143 = vld [vmem:[%s1 + $0x3c8] sm:$0xff]
  %v144 = vld [vmem:[%s1 + $0x3d0] sm:$0xff]
  %v145 = vld [vmem:[%s1 + $0x3d8] sm:$0xff]
  %v146 = vld [vmem:[%s1 + $0x3e0] sm:$0xff]
  %v147 = vld [vmem:[%s1 + $0x3e8] sm:$0xff]
  %v148 = vld [vmem:[%s1 + $0x3f0] sm:$0xff]
  %v149 = vld [vmem:[%s1 + $0x3f8] sm:$0xff]
  %v150 = vld [vmem:[%s2] sm:$0x1]
  %v152 = vperm.slane %v150, 0
  %154 = vmatpush.xpose.msra.mxu0 %v142
  %155 = vmatpush.xpose.msra.mxu0 %v134
  %156 = vmatpush.xpose.msra.mxu0 %v126
  %157 = vmatpush.xpose.msra.mxu0 %v118
  %158 = vmatpush.xpose.msra.mxu0 %v110
  %159 = vmatpush.xpose.msra.mxu0 %v102
  %160 = vmatpush.xpose.msra.mxu0 %v94
  %161 = vmatpush.xpose.msra.mxu0 %v86
  %162 = vmatpush.xpose.msra.mxu0 %v78
  %163 = vmatpush.xpose.msra.mxu0 %v70
  %164 = vmatpush.xpose.msra.mxu0 %v62
  %165 = vmatpush.xpose.msra.mxu0 %v54
  %166 = vmatpush.xpose.msra.mxu0 %v46
  %167 = vmatpush.xpose.msra.mxu0 %v38
  %168 = vmatpush.xpose.msra.mxu0 %v30
  %169 = vmatpush.xpose.msra.mxu0 %v22
  %170 = vmatmul.f32.gmra.mxu0 %v14
  %v171 = vpop.f32.mrf.mxu0
  %v172 = vadd.f32 %v152, %v171
  %173 = vdwg.mxu0
  %174 = vmatpush.xpose.msra.mxu0 %v143
  %175 = vmatpush.xpose.msra.mxu0 %v135
  %176 = vmatpush.xpose.msra.mxu0 %v127
  %177 = vmatpush.xpose.msra.mxu0 %v119
  %178 = vmatpush.xpose.msra.mxu0 %v111
  %179 = vmatpush.xpose.msra.mxu0 %v103
  %180 = vmatpush.xpose.msra.mxu0 %v95
  %181 = vmatpush.xpose.msra.mxu0 %v87
  %182 = vmatpush.xpose.msra.mxu0 %v79
  %183 = vmatpush.xpose.msra.mxu0 %v71
  %184 = vmatpush.xpose.msra.mxu0 %v63
  %185 = vmatpush.xpose.msra.mxu0 %v55
  %186 = vmatpush.xpose.msra.mxu0 %v47
  %187 = vmatpush.xpose.msra.mxu0 %v39
  %188 = vmatpush.xpose.msra.mxu0 %v31
  %189 = vmatpush.xpose.msra.mxu0 %v23
  %190 = vmatmul.f32.gmra.mxu0 %v15
  %v191 = vpop.f32.mrf.mxu0
  %v192 = vadd.f32 %v172, %v191
  %193 = vdwg.mxu0
  %194 = vmatpush.xpose.msra.mxu0 %v144
  %195 = vmatpush.xpose.msra.mxu0 %v136
  %196 = vmatpush.xpose.msra.mxu0 %v128
  %197 = vmatpush.xpose.msra.mxu0 %v120
  %198 = vmatpush.xpose.msra.mxu0 %v112
  %199 = vmatpush.xpose.msra.mxu0 %v104
  %200 = vmatpush.xpose.msra.mxu0 %v96
  %201 = vmatpush.xpose.msra.mxu0 %v88
  %202 = vmatpush.xpose.msra.mxu0 %v80
  %203 = vmatpush.xpose.msra.mxu0 %v72
  %204 = vmatpush.xpose.msra.mxu0 %v64
  %205 = vmatpush.xpose.msra.mxu0 %v56
  %206 = vmatpush.xpose.msra.mxu0 %v48
  %207 = vmatpush.xpose.msra.mxu0 %v40
  %208 = vmatpush.xpose.msra.mxu0 %v32
  %209 = vmatpush.xpose.msra.mxu0 %v24
  %210 = vmatmul.f32.gmra.mxu0 %v16
  %v211 = vpop.f32.mrf.mxu0
  %v212 = vadd.f32 %v192, %v211
  %213 = vdwg.mxu0
  %214 = vmatpush.xpose.msra.mxu0 %v145
  %215 = vmatpush.xpose.msra.mxu0 %v137
  %216 = vmatpush.xpose.msra.mxu0 %v129
  %217 = vmatpush.xpose.msra.mxu0 %v121
  %218 = vmatpush.xpose.msra.mxu0 %v113
  %219 = vmatpush.xpose.msra.mxu0 %v105
  %220 = vmatpush.xpose.msra.mxu0 %v97
  %221 = vmatpush.xpose.msra.mxu0 %v89
  %222 = vmatpush.xpose.msra.mxu0 %v81
  %223 = vmatpush.xpose.msra.mxu0 %v73
  %224 = vmatpush.xpose.msra.mxu0 %v65
  %225 = vmatpush.xpose.msra.mxu0 %v57
  %226 = vmatpush.xpose.msra.mxu0 %v49
  %227 = vmatpush.xpose.msra.mxu0 %v41
  %228 = vmatpush.xpose.msra.mxu0 %v33
  %229 = vmatpush.xpose.msra.mxu0 %v25
  %230 = vmatmul.f32.gmra.mxu0 %v17
  %v231 = vpop.f32.mrf.mxu0
  %v232 = vadd.f32 %v212, %v231
  %233 = vdwg.mxu0
  %234 = vmatpush.xpose.msra.mxu0 %v146
  %235 = vmatpush.xpose.msra.mxu0 %v138
  %236 = vmatpush.xpose.msra.mxu0 %v130
  %237 = vmatpush.xpose.msra.mxu0 %v122
  %238 = vmatpush.xpose.msra.mxu0 %v114
  %239 = vmatpush.xpose.msra.mxu0 %v106
  %240 = vmatpush.xpose.msra.mxu0 %v98
  %241 = vmatpush.xpose.msra.mxu0 %v90
  %242 = vmatpush.xpose.msra.mxu0 %v82
  %243 = vmatpush.xpose.msra.mxu0 %v74
  %244 = vmatpush.xpose.msra.mxu0 %v66
  %245 = vmatpush.xpose.msra.mxu0 %v58
  %246 = vmatpush.xpose.msra.mxu0 %v50
  %247 = vmatpush.xpose.msra.mxu0 %v42
  %248 = vmatpush.xpose.msra.mxu0 %v34
  %249 = vmatpush.xpose.msra.mxu0 %v26
  %250 = vmatmul.f32.gmra.mxu0 %v18
  %v251 = vpop.f32.mrf.mxu0
  %v252 = vadd.f32 %v232, %v251
  %253 = vdwg.mxu0
  %254 = vmatpush.xpose.msra.mxu0 %v147
  %255 = vmatpush.xpose.msra.mxu0 %v139
  %256 = vmatpush.xpose.msra.mxu0 %v131
  %257 = vmatpush.xpose.msra.mxu0 %v123
  %258 = vmatpush.xpose.msra.mxu0 %v115
  %259 = vmatpush.xpose.msra.mxu0 %v107
  %260 = vmatpush.xpose.msra.mxu0 %v99
  %261 = vmatpush.xpose.msra.mxu0 %v91
  %262 = vmatpush.xpose.msra.mxu0 %v83
  %263 = vmatpush.xpose.msra.mxu0 %v75
  %264 = vmatpush.xpose.msra.mxu0 %v67
  %265 = vmatpush.xpose.msra.mxu0 %v59
  %266 = vmatpush.xpose.msra.mxu0 %v51
  %267 = vmatpush.xpose.msra.mxu0 %v43
  %268 = vmatpush.xpose.msra.mxu0 %v35
  %269 = vmatpush.xpose.msra.mxu0 %v27
  %270 = vmatmul.f32.gmra.mxu0 %v19
  %v271 = vpop.f32.mrf.mxu0
  %v272 = vadd.f32 %v252, %v271
  %273 = vdwg.mxu0
  %274 = vmatpush.xpose.msra.mxu0 %v148
  %275 = vmatpush.xpose.msra.mxu0 %v140
  %276 = vmatpush.xpose.msra.mxu0 %v132
  %277 = vmatpush.xpose.msra.mxu0 %v124
  %278 = vmatpush.xpose.msra.mxu0 %v116
  %279 = vmatpush.xpose.msra.mxu0 %v108
  %280 = vmatpush.xpose.msra.mxu0 %v100
  %281 = vmatpush.xpose.msra.mxu0 %v92
  %282 = vmatpush.xpose.msra.mxu0 %v84
  %283 = vmatpush.xpose.msra.mxu0 %v76
  %284 = vmatpush.xpose.msra.mxu0 %v68
  %285 = vmatpush.xpose.msra.mxu0 %v60
  %286 = vmatpush.xpose.msra.mxu0 %v52
  %287 = vmatpush.xpose.msra.mxu0 %v44
  %288 = vmatpush.xpose.msra.mxu0 %v36
  %289 = vmatpush.xpose.msra.mxu0 %v28
  %290 = vmatmul.f32.gmra.mxu0 %v20
  %v291 = vpop.f32.mrf.mxu0
  %v292 = vadd.f32 %v272, %v291
  %293 = vdwg.mxu0
  %294 = vmatpush.xpose.msra.mxu0 %v149
  %295 = vmatpush.xpose.msra.mxu0 %v141
  %296 = vmatpush.xpose.msra.mxu0 %v133
  %297 = vmatpush.xpose.msra.mxu0 %v125
  %298 = vmatpush.xpose.msra.mxu0 %v117
  %299 = vmatpush.xpose.msra.mxu0 %v109
  %300 = vmatpush.xpose.msra.mxu0 %v101
  %301 = vmatpush.xpose.msra.mxu0 %v93
  %302 = vmatpush.xpose.msra.mxu0 %v85
  %303 = vmatpush.xpose.msra.mxu0 %v77
  %304 = vmatpush.xpose.msra.mxu0 %v69
  %305 = vmatpush.xpose.msra.mxu0 %v61
  %306 = vmatpush.xpose.msra.mxu0 %v53
  %307 = vmatpush.xpose.msra.mxu0 %v45
  %308 = vmatpush.xpose.msra.mxu0 %v37
  %309 = vmatpush.xpose.msra.mxu0 %v29
  %310 = vmatmul.f32.gmra.mxu0 %v21
  %v311 = vpop.f32.mrf.mxu0
  %v312 = vadd.f32 %v292, %v311
  %313 = vdwg.mxu0
  %314 = vst [vmem:[%s3] sm:$0xff] %v312
  // Predicated region
  $region14: #{linear_net_forward.1} parent=0 // pred_check
    _
  $region15: #{linear_net_forward.1} parent=0 // pred_check_branch
    %316 = sbr.rel (0) target = $region17
  $region16: #{linear_net_forward.1} parent=0 // pred_region
    _
  $region17: #{linear_net_forward.1} parent=0 // pred_fallthru
    _
  // Predicated region
  $region18: #{linear_net_forward.1} parent=0 // pred_check
    _
  $region19: #{linear_net_forward.1} parent=0 // pred_check_branch
    %318 = sbr.rel (0) target = $region21
  $region20: #{linear_net_forward.1} parent=0 // pred_region
    _
  $region21: #{linear_net_forward.1} parent=0 // pred_fallthru
    _

</llo_original>
